<compile_context>
chip_gen: v7x
topology: tpu7x:2x2x1
jax: 0.10.0
libtpu: 0.0.40
codegen_flags: <defaults>
</compile_context>

<pallas_src>
import functools
import math

import jax
import jax.numpy as jnp
from jax.experimental import pallas as pl
from jax.experimental.pallas import tpu as pltpu


def _round_up(a, b):
    return ((a + b - 1) // b) * b


def _ce_kernel(x_ref, y_ref, o_ref, *, inv_log_c):
    """Per-row normalized cross entropy: (logsumexp(x) - x[y]) / log(C)."""
    x = x_ref[...]                                  # (tb, C), native dtype
    y = y_ref[...]                                  # (tb, 1) int32
    tb, c = x.shape

    # Row max in native dtype (exact), carried as f32 for the stable lse.
    m = jnp.max(x, axis=-1, keepdims=True).astype(jnp.float32)     # (tb, 1)

    # Target logit via lane-iota mask; compare/select in native dtype,
    # accumulate in f32 (exactly one hit per row, so the sum is exact).
    cls = jax.lax.broadcasted_iota(jnp.int32, (tb, c), 1)
    tgt = jnp.sum(
        jnp.where(cls == y, x, jnp.zeros_like(x)).astype(jnp.float32),
        axis=-1, keepdims=True)                                    # (tb, 1)

    # exp/sum/log accumulated in f32 for numerical accuracy.
    s = jnp.sum(jnp.exp(x.astype(jnp.float32) - m),
                axis=-1, keepdims=True)                            # (tb, 1)

    loss = (m + jnp.log(s) - tgt) * inv_log_c
    o_ref[...] = loss.astype(o_ref.dtype)


@functools.partial(jax.jit, static_argnames=("tile_bytes",))
def cross_entropy_loss(x, y, tile_bytes=4 * 1024 * 1024):
    """x: [..., C] logits (f32 or bf16). y: [...] int class ids.

    Returns [...] f32 losses, matching the PyTorch module (reduction='none',
    divided by log(n_classes)).
    """
    *batch_shape, c = x.shape
    n = 1
    for d in batch_shape:
        n *= d

    xf = x.reshape(n, c)
    yf = y.reshape(n, 1).astype(jnp.int32)

    itemsize = jnp.dtype(x.dtype).itemsize

    # Row tile sized so the input tile is ~tile_bytes of the *input* dtype
    # (dtype-aware), rounded to a sublane multiple of 8, never more rows than
    # needed to cover n.
    vmem_rows = max(8, (tile_bytes // (c * itemsize)) // 8 * 8)
    tb = max(8, min(vmem_rows, _round_up(n, 8)))

    # Guarantee >= 2 grid steps when there is enough work so the parallel
    # axis splits across v7x's two TensorCores.
    while tb > 8 and pl.cdiv(n, tb) < 2:
        tb = max(8, _round_up(tb // 2, 8))

    grid = (pl.cdiv(n, tb),)
    kernel = functools.partial(_ce_kernel, inv_log_c=1.0 / math.log(c))

    cost = pl.CostEstimate(
        flops=int(5 * n * c),
        transcendentals=int(n * (c + 1)),
        bytes_accessed=int(n * c * itemsize + 2 * n * 4),
    )

    out = pl.pallas_call(
        kernel,
        out_shape=jax.ShapeDtypeStruct((n, 1), jnp.float32),
        grid_spec=pl.GridSpec(
            grid=grid,
            in_specs=[
                pl.BlockSpec((tb, c), lambda i: (i, 0)),   # logits tile
                pl.BlockSpec((tb, 1), lambda i: (i, 0)),   # targets tile
            ],
            out_specs=pl.BlockSpec((tb, 1), lambda i: (i, 0)),
        ),
        compiler_params=pltpu.CompilerParams(
            dimension_semantics=("parallel",),
            vmem_limit_bytes=48 * 1024 * 1024,
        ),
        cost_estimate=cost,
    )(xf, yf)

    return out[:, 0].reshape(tuple(batch_shape))


def _reference(x, y):
    """Pure-JAX reference of the PyTorch module."""
    c = x.shape[-1]
    logits = x.reshape(-1, c).astype(jnp.float32)
    tgt = y.reshape(-1)
    lse = jax.scipy.special.logsumexp(logits, axis=-1)
    tl = jnp.take_along_axis(logits, tgt[:, None].astype(jnp.int32), axis=-1)[:, 0]
    return ((lse - tl) / math.log(c)).reshape(x.shape[:-1])


if __name__ == "__main__":
    key = jax.random.PRNGKey(0)
    k1, k2, k3, k4, k5, k6 = jax.random.split(key, 6)

    # Case 1: [batch=2, seq=8, n_classes=128] (lane-dense class dim).
    x1 = jax.random.normal(k1, (2, 8, 128), jnp.float32)
    y1 = jax.random.randint(k2, (2, 8), 0, 128)
    out1 = jax.block_until_ready(cross_entropy_loss(x1, y1))
    ref1 = _reference(x1, y1)
    assert out1.shape == (2, 8)
    assert jnp.allclose(out1, ref1, atol=1e-5, rtol=1e-5)

    # Case 2: ragged row count + non-multiple-of-128 class dim
    # (exercises the partial last block path).
    x2 = jax.random.normal(k3, (3, 5, 37), jnp.float32)
    y2 = jax.random.randint(k4, (3, 5), 0, 37)
    out2 = jax.block_until_ready(cross_entropy_loss(x2, y2))
    ref2 = _reference(x2, y2)
    assert out2.shape == (3, 5)
    assert jnp.allclose(out2, ref2, atol=1e-5, rtol=1e-5)

    # Case 3: bf16 logits (native-dtype select path, f32 exp/log accumulation).
    x3 = jax.random.normal(k5, (4, 16, 64), jnp.float32).astype(jnp.bfloat16)
    y3 = jax.random.randint(k6, (4, 16), 0, 64)
    out3 = jax.block_until_ready(cross_entropy_loss(x3, y3))
    ref3 = _reference(x3, y3)
    assert out3.shape == (4, 16)
    assert jnp.allclose(out3, ref3, atol=1e-4, rtol=1e-4)

    print("KERNEL_OK")
</pallas_src>

<mosaic_0001>
module attributes {stable_mosaic.version = 11 : i64} {
  func.func @_ce_kernel(%arg0: i32, %arg1: memref<8x128xf32, #tpu.memory_space<vmem>>, %arg2: memref<8x1xi32, #tpu.memory_space<vmem>>, %arg3: memref<8x1xf32, #tpu.memory_space<vmem>>) attributes {dimension_semantics = [#tpu.dimension_semantics<parallel>], iteration_bounds = array<i64: 2>, scalar_prefetch = 0 : i64, scratch_operands = 0 : i64, tpu.core_type = #tpu.core_type<tc>, window_params = [{transform_indices = @transform_0, window_bounds = array<i64: 8, 128>}, {transform_indices = @transform_1, window_bounds = array<i64: 8, 1>}, {transform_indices = @transform_2, window_bounds = array<i64: 8, 1>}]} {
    %c0 = arith.constant 0 : index
    %c0_0 = arith.constant 0 : index
    %0 = vector.load %arg1[%c0, %c0_0] : memref<8x128xf32, #tpu.memory_space<vmem>>, vector<8x128xf32>
    %c0_1 = arith.constant 0 : index
    %c0_2 = arith.constant 0 : index
    %1 = vector.load %arg2[%c0_1, %c0_2] : memref<8x1xi32, #tpu.memory_space<vmem>>, vector<8x1xi32>
    %cst = arith.constant dense<0xFF800000> : vector<8xf32>
    %2 = vector.multi_reduction <maximumf>, %0, %cst [1] : vector<8x128xf32> to vector<8xf32>
    %3 = vector.shape_cast %2 : vector<8xf32> to vector<8x1xf32>
    %4 = tpu.iota {dimensions = array<i32: 1>} : vector<8x128xi32>
    %5 = vector.broadcast %1 : vector<8x1xi32> to vector<8x128xi32>
    %6 = arith.cmpi eq, %4, %5 : vector<8x128xi32>
    %cst_3 = arith.constant 0.000000e+00 : f32
    %7 = vector.broadcast %cst_3 : f32 to vector<8x128xf32>
    %8 = arith.select %6, %0, %7 : vector<8x128xi1>, vector<8x128xf32>
    %cst_4 = arith.constant dense<0.000000e+00> : vector<8xf32>
    %9 = vector.multi_reduction <add>, %8, %cst_4 [1] : vector<8x128xf32> to vector<8xf32>
    %10 = vector.shape_cast %9 : vector<8xf32> to vector<8x1xf32>
    %11 = vector.broadcast %3 : vector<8x1xf32> to vector<8x128xf32>
    %12 = arith.subf %0, %11 : vector<8x128xf32>
    %13 = math.exp %12 : vector<8x128xf32>
    %cst_5 = arith.constant dense<0.000000e+00> : vector<8xf32>
    %14 = vector.multi_reduction <add>, %13, %cst_5 [1] : vector<8x128xf32> to vector<8xf32>
    %15 = vector.shape_cast %14 : vector<8xf32> to vector<8x1xf32>
    %16 = math.log %15 : vector<8x1xf32>
    %17 = arith.addf %3, %16 : vector<8x1xf32>
    %18 = arith.subf %17, %10 : vector<8x1xf32>
    %cst_6 = arith.constant 0.206099287 : f32
    %19 = vector.broadcast %cst_6 : f32 to vector<8x1xf32>
    %20 = arith.mulf %18, %19 : vector<8x1xf32>
    %c0_7 = arith.constant 0 : index
    %c0_8 = arith.constant 0 : index
    %21 = vector.load %arg3[%c0_7, %c0_8] : memref<8x1xf32, #tpu.memory_space<vmem>>, vector<8x1xf32>
    tpu.vector_store %arg3[%c0_7, %c0_8], %20 {strides = array<i32>} : memref<8x1xf32, #tpu.memory_space<vmem>>, vector<8x1xf32>,
    return
  }
  func.func @transform_0(%arg0: i32) -> (i32, i32) {
    %c0_i32 = arith.constant 0 : i32
    %c0_i32_0 = arith.constant 0 : i32
    return %arg0, %c0_i32 : i32, i32
  }
  func.func @transform_1(%arg0: i32) -> (i32, i32) {
    %c0_i32 = arith.constant 0 : i32
    %c0_i32_0 = arith.constant 0 : i32
    return %arg0, %c0_i32 : i32, i32
  }
  func.func @transform_2(%arg0: i32) -> (i32, i32) {
    %c0_i32 = arith.constant 0 : i32
    %c0_i32_0 = arith.constant 0 : i32
    return %arg0, %c0_i32 : i32, i32
  }
}

</mosaic_0001>

<llo_original>
// kernel: squeeze.1
$region0: #{squeeze.1}
  %s0 = inlined_call_operand.vmem [shape: f32[16], index: 0, kind: input, shape index: {}]
  %s1 = inlined_call_operand.hbm [shape: f32[2,8], index: 1, kind: output, shape index: {}]
  $region1: #{squeeze.1} parent=0
    #allocation0 [shape = 'u8[1024]{0}', space=vmem, size = 0x400, scoped, tag = 'operand span for operand 1']
    #allocation1 [shape = 's32[1]{0}', space=sflag, size = 0x4, scoped, tag = 'scoped memory for squeeze.1']
    #allocation2 [shape = 'u8[4096]{0}', space=vmem, size = 0x1000, scoped, tag = 'scoped mem for output reshape']
    #allocation3 [shape = 'u8[4096]{0}', space=vmem, size = 0x1000, scoped, tag = 'scoped mem for input reshape']
    %2 = vsyncpa [#allocation1], 0
    %s4 = sshllo.u32 0, 1
    %v5 = vld [vmem:[%s0] sm:%s4]
    %6 = vst [vmem:[#allocation3] sm:%s4] %v5
    %v7 = vld [vmem:[#allocation3] sm:$0x1]
    %vm8 = vcmask 64512
    %9 = vst.msk [vmem:[#allocation2] sm:$0x1] %vm8, %v7
    %v10 = vld [vmem:[#allocation3] sm:$0x1]
    %11 = vrot.lane.b32.xlu0 %v10, 120
    %v12 = vpop.permute.xlu0 %11
    %vm13 = vcmask 64512
    %s14 = scalar_lea.vmem [#allocation2], 1
    %15 = vst.msk [vmem:[%s14] sm:$0x1] %vm13, %v12
    %s17 = sshllo.u32 0, 2
    %v19 = vld [vmem:[#allocation2] sm:%s17]
    %s20 = sshllo.u32 0, 2
    %21 = vst [vmem:[#allocation0] sm:%s20] %v19
    %s23 = ssub.s32 32, 32
    %24 = vsyncadd [#allocation1], %s23
    %s26 = sshll.u32 [#allocation0], 4
    %s27 = int_to_ptr.vmem [resolvable:$true] %s26
    %29 = dma.vmem_to_hbm [thread:$0]  %s27, 32, %s1, [#allocation1]
    %30 = dma.done [#allocation1], 32
    %31 = vsyncpa [#allocation1], 1

// kernel: cross_entropy_loss.1
$region0: #{cross_entropy_loss.1}
  #allocation0 [shape = 'u32[]', space=smem, size = 0x4, offset = 0x4, fixed_abs, tag = 'smem constant byte address 0x4 - core index']
  #allocation1 [shape = 'u32[144,128]{1,0:T(1,128)}', space=vmem, size = 0x12000, scoped, tag = 'internal scratch']
  %s0 = inlined_call_operand.vmem [shape: f32[16,128], index: 0, kind: input, shape index: {}]
  %s1 = inlined_call_operand.vmem [shape: s32[16,1], index: 1, kind: input, shape index: {}]
  %s2 = inlined_call_operand.vmem [shape: f32[16,1], index: 2, kind: output, shape index: {}]
  %s3 = sld [smem:[#allocation0]]
  $region41: #{cross_entropy_loss.1} parent=0
    _
  %s5 = ssub.s32 1, %s3
  %s6 = scalar_select 0, %s5, %s3
  loop: start=0, step=1, limit=4
  $region2: #{cross_entropy_loss.1} parent=0 // loop_pre_header
    _
  $region3: #{cross_entropy_loss.1} parent=0 // loop_header
    %s8 = sphi 0, %s12
    %p9 = scmp.ge.s32.totalorder %s8, 4
    %s18 = sphi 0, %s20
    %s21 = sphi 0, %s18
    %s22 = sphi 0, %s21
    %s38 = sphi 0, %s22
    %s44 = sphi 0, %s46
    %s47 = sphi 0, %s44
    %s48 = sphi 0, %s47
    %s64 = sphi 0, %s48
    %s70 = sphi 0, %s72
    %s73 = sphi 0, %s70
    %s74 = sphi 0, %s73
    %s90 = sphi 0, %s74
  $region4: #{cross_entropy_loss.1} parent=0 // loop_header_branch
    %11 = sbr.rel (%p9) target = $region8
  $region5: #{cross_entropy_loss.1} parent=0 // loop_body
    %s13 = ssub.s32 %s8, 1
    %s14 = ssub.s32 %s8, 2
    %s15 = sadd.s32 %s8, 1
    %s16 = ssub.s32 %s8, %s15
    %p17 = scmp.eq.s32.totalorder %s16, 0
    %s19 = sadd.s32 %s18, 1
    %s20 = scalar_select %p17, %s18, %s19
    %p23 = pneg %p17
    %p24 = scmp.eq.s32.totalorder %s8, 1
    %p25 = por %p23, %p24
    %p26 = scmp.ne.s32.totalorder %s18, %s21
    %p27 = scmp.eq.s32.totalorder %s8, 0
    %p28 = por %p26, %p27
    %p29 = scmp.ne.s32.totalorder %s18, %s21
    %p30 = scmp.eq.s32.totalorder %s13, 1
    %p31 = por %p29, %p30
    %p32 = scmp.ne.s32.totalorder %s21, %s22
    %p33 = scmp.eq.s32.totalorder %s13, 0
    %p34 = por %p32, %p33
    %p35 = scmp.ne.s32.totalorder %s21, %s22
    %p36 = scmp.eq.s32.totalorder %s14, 1
    %p37 = por %p35, %p36
    %p39 = scmp.ne.s32.totalorder %s22, %s38
    %p40 = scmp.eq.s32.totalorder %s14, 0
    %p41 = por %p39, %p40
    %s42 = ssub.s32 %s8, %s15
    %p43 = scmp.eq.s32.totalorder %s42, 0
    %s45 = sadd.s32 %s44, 1
    %s46 = scalar_select %p43, %s44, %s45
    %p49 = pneg %p43
    %p50 = scmp.eq.s32.totalorder %s8, 1
    %p51 = por %p49, %p50
    %p52 = scmp.ne.s32.totalorder %s44, %s47
    %p53 = scmp.eq.s32.totalorder %s8, 0
    %p54 = por %p52, %p53
    %p55 = scmp.ne.s32.totalorder %s44, %s47
    %p56 = scmp.eq.s32.totalorder %s13, 1
    %p57 = por %p55, %p56
    %p58 = scmp.ne.s32.totalorder %s47, %s48
    %p59 = scmp.eq.s32.totalorder %s13, 0
    %p60 = por %p58, %p59
    %p61 = scmp.ne.s32.totalorder %s47, %s48
    %p62 = scmp.eq.s32.totalorder %s14, 1
    %p63 = por %p61, %p62
    %p65 = scmp.ne.s32.totalorder %s48, %s64
    %p66 = scmp.eq.s32.totalorder %s14, 0
    %p67 = por %p65, %p66
    %s68 = ssub.s32 %s8, %s15
    %p69 = scmp.eq.s32.totalorder %s68, 0
    %s71 = sadd.s32 %s70, 1
    %s72 = scalar_select %p69, %s70, %s71
    %p75 = pneg %p69
    %p76 = scmp.eq.s32.totalorder %s8, 1
    %p77 = por %p75, %p76
    %p78 = scmp.ne.s32.totalorder %s70, %s73
    %p79 = scmp.eq.s32.totalorder %s8, 0
    %p80 = por %p78, %p79
    %p81 = scmp.ne.s32.totalorder %s70, %s73
    %p82 = scmp.eq.s32.totalorder %s13, 1
    %p83 = por %p81, %p82
    %p84 = scmp.ne.s32.totalorder %s73, %s74
    %p85 = scmp.eq.s32.totalorder %s13, 0
    %p86 = por %p84, %p85
    %p87 = scmp.ne.s32.totalorder %s73, %s74
    %p88 = scmp.eq.s32.totalorder %s14, 1
    %p89 = por %p87, %p88
    %p91 = scmp.ne.s32.totalorder %s74, %s90
    %p92 = scmp.eq.s32.totalorder %s14, 0
    %p93 = por %p91, %p92
    %p94 = scmp.le.s32.totalorder 1, %s8
    %p95 = scmp.lt.s32.totalorder %s8, 3
    %p96 = pnand %p94, %p95
    %p97 = pneg %p96
    // Predicated region
    $region9: #{cross_entropy_loss.1} parent=5 // pred_check
      _
    $region10: #{cross_entropy_loss.1} parent=5 // pred_check_branch
      %99 = sbr.rel (%p96) target = $region12
    $region11: #{cross_entropy_loss.1} parent=5 // pred_region
      %s100 = ssub.s32 %s8, 1
    $region12: #{cross_entropy_loss.1} parent=5 // pred_fallthru
      _
    %p101 = scmp.lt.s32.totalorder %s8, 2
    // Predicated region
    $region13: #{cross_entropy_loss.1} parent=5 // pred_check
      %p102 = pneg %p101
    $region14: #{cross_entropy_loss.1} parent=5 // pred_check_branch
      %104 = sbr.rel (%p102) target = $region16
    $region15: #{cross_entropy_loss.1} parent=5 // pred_region
      // Predicated region
      $region17: #{cross_entropy_loss.1} parent=15 // pred_check
        %p105 = pneg %p28
      $region18: #{cross_entropy_loss.1} parent=15 // pred_check_branch
        %107 = sbr.rel (%p105) target = $region20
      $region19: #{cross_entropy_loss.1} parent=15 // pred_region
        %p108 = scmp.lt.s32.totalorder %s8, 1
        %s109 = scalar_select %p108, %s8, 1
        %s110 = smul.addr %s109, 8
        %s111 = scalar_lea.vmem %s0, %s110
      $region20: #{cross_entropy_loss.1} parent=15 // pred_fallthru
        _
      // Predicated region
      $region21: #{cross_entropy_loss.1} parent=15 // pred_check
        %p112 = pneg %p54
      $region22: #{cross_entropy_loss.1} parent=15 // pred_check_branch
        %114 = sbr.rel (%p112) target = $region24
      $region23: #{cross_entropy_loss.1} parent=15 // pred_region
        %p115 = scmp.lt.s32.totalorder %s8, 1
        %s116 = scalar_select %p115, %s8, 1
        %s117 = smul.addr %s116, 8
        %s118 = scalar_lea.vmem %s1, %s117
      $region24: #{cross_entropy_loss.1} parent=15 // pred_fallthru
        _
    $region16: #{cross_entropy_loss.1} parent=5 // pred_fallthru
      _
    %p119 = scmp.le.s32.totalorder 1, %s8
    %p120 = scmp.lt.s32.totalorder %s8, 3
    %p121 = pnand %p119, %p120
    %p122 = pneg %p121
    // Predicated region
    $region25: #{cross_entropy_loss.1} parent=5 // pred_check
      _
    $region26: #{cross_entropy_loss.1} parent=5 // pred_check_branch
      %124 = sbr.rel (%p121) target = $region28
    $region27: #{cross_entropy_loss.1} parent=5 // pred_region
      %s125 = ssub.s32 %s8, 1
      %p126 = scmp.lt.s32.totalorder %s13, 1
      %s127 = scalar_select %p126, %s13, 1
      %s128 = smul.addr %s127, 8
      %s129 = scalar_lea.vmem %s0, %s128
      %p130 = pneg %p34
      %p131 = pneg %p31
      %p132 = scmp.lt.s32.totalorder %s13, 1
      %s133 = scalar_select %p132, %s13, 1
      %s134 = smul.addr %s133, 8
      %s135 = scalar_lea.vmem %s1, %s134
      %p136 = pneg %p60
      %p137 = pneg %p57
      %p138 = pneg %p86
      %p139 = pneg %p83
      %p140 = scmp.lt.s32.totalorder %s13, 1
      %s141 = scalar_select %p140, %s13, 1
      %s142 = smul.addr %s141, 8
      %s143 = scalar_lea.vmem %s2, %s142
      %p144 = scmp.lt.s32.totalorder %s13, 1
      %s145 = scalar_select %p144, %s13, 1
      %s146 = smul.addr %s145, 8
      %s147 = scalar_lea.vmem %s0, %s146
      %p148 = scmp.lt.s32.totalorder %s13, 1
      %s149 = scalar_select %p148, %s13, 1
      %s150 = smul.addr %s149, 8
      %s151 = scalar_lea.vmem %s1, %s150
      %p152 = scmp.lt.s32.totalorder %s13, 1
      %s153 = scalar_select %p152, %s13, 1
      %s154 = smul.addr %s153, 8
      %s155 = scalar_lea.vmem %s2, %s154
      %v156 = vld [vmem:[%s147] sm:$0xff]
      %v157 = vld [vmem:[%s151] sm:$0xff]
      %158 = vmax.xlane.f32.xlu0 %v156
      %v159 = vpop.xlane.xlu0 %158
      %v160 = vlaneseq
      %v161 = vand.u32 %v160, 127
      %162 = vset.pattern.permute.xlu0 0
      %163 = vperm.xlu0 %162, %v157
      %v164 = vpop.permute.xlu0 %163
      %vm165 = vcmp.eq.s32.totalorder %v161, %v164
      %v166 = vsel %vm165, %v156, 0.0
      %167 = vadd.xlane.f32.xlu0 %v166
      %v168 = vpop.xlane.xlu0 %167
      %v169 = vsub.f32 %v156, %v159
      %v170 = vmul.f32 %v169, 1.442695
      %v171 = vpow.pop %v170
      %172 = vadd.xlane.f32.xlu0 %v171
      %v173 = vpop.xlane.xlu0 %172
      %v174 = vlog2.pop %v173
      %v175 = vmul.f32 %v174, 0.6931472
      %v176 = vadd.f32 %v159, %v175
      %v177 = vsub.f32 %v176, %v168
      %v178 = vmul.f32 %v177, 0.20609929
      %vm179 = vcmask 7168
      %180 = vst.msk [vmem:[%s155] sm:$0xff] %vm179, %v178
      %p181 = scmp.lt.s32.totalorder %s13, 1
      %s182 = scalar_select %p181, %s13, 1
      %s183 = smul.addr %s182, 8
      %s184 = scalar_lea.vmem %s2, %s183
      // Predicated region
      $region29: #{cross_entropy_loss.1} parent=27 // pred_check
        %p185 = pneg %p83
      $region30: #{cross_entropy_loss.1} parent=27 // pred_check_branch
        %187 = sbr.rel (%p185) target = $region32
      $region31: #{cross_entropy_loss.1} parent=27 // pred_region
        _
      $region32: #{cross_entropy_loss.1} parent=27 // pred_fallthru
        _
    $region28: #{cross_entropy_loss.1} parent=5 // pred_fallthru
      _
    %p188 = scmp.le.s32.totalorder 2, %s8
    // Predicated region
    $region33: #{cross_entropy_loss.1} parent=5 // pred_check
      %p189 = pneg %p188
    $region34: #{cross_entropy_loss.1} parent=5 // pred_check_branch
      %191 = sbr.rel (%p189) target = $region36
    $region35: #{cross_entropy_loss.1} parent=5 // pred_region
      %s192 = ssub.s32 %s8, 2
      // Predicated region
      $region37: #{cross_entropy_loss.1} parent=35 // pred_check
        %p193 = pneg %p89
      $region38: #{cross_entropy_loss.1} parent=35 // pred_check_branch
        %195 = sbr.rel (%p193) target = $region40
      $region39: #{cross_entropy_loss.1} parent=35 // pred_region
        %p196 = scmp.lt.s32.totalorder %s14, 1
        %s197 = scalar_select %p196, %s14, 1
        %s198 = smul.addr %s197, 8
        %s199 = scalar_lea.vmem %s2, %s198
      $region40: #{cross_entropy_loss.1} parent=35 // pred_fallthru
        _
    $region36: #{cross_entropy_loss.1} parent=5 // pred_fallthru
      _
  $region6: #{cross_entropy_loss.1} parent=0 // loop_footer
    %s12 = sadd.s32 1, %s8
  $region7: #{cross_entropy_loss.1} parent=0 // loop_footer_branch
    %7 = sbr.rel target = $region3
  $region8: #{cross_entropy_loss.1} parent=0 // loop_exit
    _

</llo_original>
